<compile_context>
chip_gen: v5e
topology: v5e:2x2
jax: 0.10.0
libtpu: 0.0.40
codegen_flags: <defaults>
</compile_context>

<pallas_src>
import jax
import jax.numpy as jnp
from jax.experimental import pallas as pl
from jax.experimental.pallas import tpu as pltpu

IN_DIM = 512
LRELU_SLOPE = 0.2          # common `lrelu` helper slope in these codebases
BN_EPS = 1e-5
BN_MOMENTUM = 0.9          # matches nn.BatchNorm1d(1, momentum=0.9)
LANE = 128
SUBLANE = 8
MAX_BATCH_TILE = 2048      # rows per grid step (2048*512*4B = 4 MiB h tile)
MIN_CORE_SPLIT_TILE = 512  # don't shrink tiles below this just to get blocks
VMEM_LIMIT_BYTES = 32 * 1024 * 1024


def _round_up(x, m):
    return (x + m - 1) // m * m


def _choose_batch_tiling(batch):
    """Pick (tile_rows, num_blocks) so padding waste <= a few sublanes.

    Cap tiles at MAX_BATCH_TILE, but prefer >= 4 grid blocks (v7x: 2 TCs share
    HBM and split the 'parallel' axis) as long as each block keeps at least
    MIN_CORE_SPLIT_TILE rows.
    """
    nb = pl.cdiv(batch, MAX_BATCH_TILE)
    nb = max(nb, min(4, pl.cdiv(batch, MIN_CORE_SPLIT_TILE)))
    nb = max(nb, 1)
    tb = _round_up(pl.cdiv(batch, nb), SUBLANE)
    nb = pl.cdiv(batch, tb)
    return tb, nb


# ---------------------------------------------------------------------------
# Kernels
# ---------------------------------------------------------------------------

def _make_fc1_stats_kernel(batch):
    """fc1 for one batch tile + per-tile BN batch statistics.

    y = cast(h) @ w1 + b1 (f32 accumulation), stored in y_ref.dtype.
    stats block: [0,0,0]=sum(y_valid), [0,0,1]=sum(y_valid^2) over the rows
    belonging to the real batch (ragged-tile garbage rows masked out). The
    zero-padded aux columns of w1/b1 yield exact zeros, so they contribute
    nothing to either sum.
    """
    def kernel(h_ref, w1_ref, b1_ref, y_ref, stats_ref):
        x = h_ref[...].astype(w1_ref.dtype)        # in-kernel cast (f32 -> bf16)
        y = jnp.dot(x, w1_ref[...], preferred_element_type=jnp.float32)
        y = y + b1_ref[...]
        y_ref[...] = y.astype(y_ref.dtype)

        tb = y.shape[0]
        row0 = pl.program_id(0) * tb
        rows = jax.lax.broadcasted_iota(jnp.int32, y.shape, 0) + row0
        yv = jnp.where(rows < batch, y, 0.0)       # mask padded/garbage rows
        s = jnp.sum(yv)
        sq = jnp.sum(yv * yv)

        ri = jax.lax.broadcasted_iota(jnp.int32, (SUBLANE, LANE), 0)
        ci = jax.lax.broadcasted_iota(jnp.int32, (SUBLANE, LANE), 1)
        blk = jnp.where((ri == 0) & (ci == 0), s,
                        jnp.where((ri == 0) & (ci == 1), sq, 0.0))
        stats_ref[...] = blk[None, :, :]
    return kernel


def _bn_head_kernel(ss_ref, y_ref, w2_ref, b2_ref, o_ref):
    """out = tanh(lrelu(y * scale + shift) @ w2 + b2) for one batch tile.

    ss_ref (SMEM, shape (2,)): [scale, shift] — the single-channel BatchNorm
    collapsed to two scalars (scale = gamma*rsqrt(var+eps), shift = beta-scale*mean).
    """
    y = y_ref[...].astype(jnp.float32) * ss_ref[0] + ss_ref[1]
    y = jnp.where(y >= 0.0, y, LRELU_SLOPE * y)
    z = jnp.dot(y.astype(w2_ref.dtype), w2_ref[...],
                preferred_element_type=jnp.float32)
    o_ref[...] = jnp.tanh(z + b2_ref[...]).astype(o_ref.dtype)


def _fused_eval_kernel(h_ref, w1_ref, b1_ref, w2_ref, b2_ref, o_ref):
    """Eval path: BN already folded into (w1, b1): fc1 -> lrelu -> fc2 -> tanh."""
    x = h_ref[...].astype(w1_ref.dtype)            # in-kernel cast (f32 -> bf16)
    y = jnp.dot(x, w1_ref[...], preferred_element_type=jnp.float32)
    y = y + b1_ref[...]
    y = jnp.where(y >= 0.0, y, LRELU_SLOPE * y)
    z = jnp.dot(y.astype(w2_ref.dtype), w2_ref[...],
                preferred_element_type=jnp.float32)
    o_ref[...] = jnp.tanh(z + b2_ref[...]).astype(o_ref.dtype)


# ---------------------------------------------------------------------------
# Parameter preparation (hoisted out of the per-step forward)
# ---------------------------------------------------------------------------

def _pad_2d(x, rows, cols, dtype):
    r, c = x.shape
    return jnp.zeros((rows, cols), dtype).at[:r, :c].set(x.astype(dtype))


def prepare_params(params, matmul_dtype=jnp.bfloat16):
    """Pad / cast weights once (MXU- and lane-friendly shapes) and fold the
    eval-mode BatchNorm (running stats => pure affine) into fc1.

    Note: matmul_dtype=float32 is a test-only path (v5e's MXU is bf16/int,
    f32 dots are emulated); production should keep bf16.
    Re-run prepare_params after the BN running stats change if you need the
    eval path to reflect them.
    """
    w1_t, b1, w2_t, b2, bn = params
    aux = w1_t.shape[1]
    spatial = w2_t.shape[1]
    aux_p = _round_up(aux, LANE)
    sp_p = _round_up(spatial, LANE)
    gamma, beta, rm, rv = bn[0], bn[1], bn[2], bn[3]

    w1p = _pad_2d(w1_t, IN_DIM, aux_p, matmul_dtype)
    b1p = _pad_2d(b1.reshape(1, aux), 1, aux_p, jnp.float32)
    w2p = _pad_2d(w2_t, aux_p, sp_p, matmul_dtype)
    b2p = _pad_2d(b2.reshape(1, spatial), 1, sp_p, jnp.float32)

    scale = gamma * jax.lax.rsqrt(rv + BN_EPS)
    w1p_ev = _pad_2d(w1_t * scale, IN_DIM, aux_p, matmul_dtype)
    b1p_ev = _pad_2d((scale * (b1 - rm) + beta).reshape(1, aux), 1, aux_p,
                     jnp.float32)

    return dict(w1p=w1p, b1p=b1p, w1p_ev=w1p_ev, b1p_ev=b1p_ev,
                w2p=w2p, b2p=b2p, bn=bn,
                aux=aux, spatial=spatial, aux_p=aux_p, sp_p=sp_p,
                matmul_dtype=matmul_dtype)


def _cost(flops, transcendentals, in_arrays, out_bytes):
    nbytes = int(out_bytes) + sum(int(a.size) * a.dtype.itemsize for a in in_arrays)
    return pl.CostEstimate(flops=int(flops), transcendentals=int(transcendentals),
                           bytes_accessed=int(nbytes))


# ---------------------------------------------------------------------------
# Forward
# ---------------------------------------------------------------------------

def spatial_predictor_forward(h, prepared, is_training=True,
                              out_dtype=jnp.bfloat16):
    """h: (B, 1, 512) f32 -> (out (B, 1, spatial_dim) out_dtype, new_bn (4,)).

    bn layout: [gamma, beta, running_mean, running_var]. In training mode the
    returned bn carries momentum-updated running stats (PyTorch BatchNorm
    semantics, unbiased var); in eval they are passed through unchanged.
    In the default bf16 path the training batch statistics come from
    bf16-input matmuls (f32 accumulation), so they drift slightly from a pure
    f32 reference — within bf16 tolerance.
    """
    w1p, b1p = prepared["w1p"], prepared["b1p"]
    w1p_ev, b1p_ev = prepared["w1p_ev"], prepared["b1p_ev"]
    w2p, b2p = prepared["w2p"], prepared["b2p"]
    bn = prepared["bn"]
    aux, spatial = prepared["aux"], prepared["spatial"]
    aux_p, sp_p = prepared["aux_p"], prepared["sp_p"]
    mdt = prepared["matmul_dtype"]

    B = h.shape[0]
    assert h.shape[1] == 1 and h.shape[2] == IN_DIM

    h2d = h.reshape(B, IN_DIM)                 # free reshape; stays f32 in HBM
    tb, nb = _choose_batch_tiling(B)

    cparams = pltpu.CompilerParams(
        dimension_semantics=("parallel",),     # batch blocks split across TCs
        vmem_limit_bytes=VMEM_LIMIT_BYTES,
    )
    out_spec = pl.BlockSpec((tb, sp_p), lambda i: (i, 0))
    out_shape = jax.ShapeDtypeStruct((B, sp_p), out_dtype)
    out_bytes = B * sp_p * jnp.dtype(out_dtype).itemsize

    if not is_training:
        # ---- eval: BatchNorm folded into fc1 (done once in prepare_params) ----
        out_p = pl.pallas_call(
            _fused_eval_kernel,
            out_shape=out_shape,
            grid=(nb,),
            in_specs=[
                pl.BlockSpec((tb, IN_DIM), lambda i: (i, 0)),      # h (tiled)
                pl.BlockSpec((IN_DIM, aux_p), lambda i: (0, 0)),   # w1 (resident)
                pl.BlockSpec((1, aux_p), lambda i: (0, 0)),        # b1 (resident)
                pl.BlockSpec((aux_p, sp_p), lambda i: (0, 0)),     # w2 (resident)
                pl.BlockSpec((1, sp_p), lambda i: (0, 0)),         # b2 (resident)
            ],
            out_specs=out_spec,
            compiler_params=cparams,
            cost_estimate=_cost(2 * B * (IN_DIM * aux_p + aux_p * sp_p),
                                B * sp_p, (h2d, w1p_ev, b1p_ev, w2p, b2p),
                                out_bytes),
        )(h2d, w1p_ev, b1p_ev, w2p, b2p)
        out = out_p[:, :spatial].reshape(B, 1, spatial)
        return out, bn

    # ---- training: fc1 + fused per-tile stats -> combine -> head kernel ----
    y1_dtype = mdt                      # bf16 in production, f32 in f32 test path
    y1_bytes = B * aux_p * jnp.dtype(y1_dtype).itemsize
    stats_bytes = nb * SUBLANE * LANE * 4

    y1, stats = pl.pallas_call(
        _make_fc1_stats_kernel(B),
        out_shape=(jax.ShapeDtypeStruct((B, aux_p), y1_dtype),
                   jax.ShapeDtypeStruct((nb, SUBLANE, LANE), jnp.float32)),
        grid=(nb,),
        in_specs=[
            pl.BlockSpec((tb, IN_DIM), lambda i: (i, 0)),
            pl.BlockSpec((IN_DIM, aux_p), lambda i: (0, 0)),
            pl.BlockSpec((1, aux_p), lambda i: (0, 0)),
        ],
        out_specs=(
            pl.BlockSpec((tb, aux_p), lambda i: (i, 0)),
            pl.BlockSpec((1, SUBLANE, LANE), lambda i: (i, 0, 0)),
        ),
        compiler_params=cparams,
        cost_estimate=_cost(2 * B * IN_DIM * aux_p, 0, (h2d, w1p, b1p),
                            y1_bytes + stats_bytes),
    )(h2d, w1p, b1p)

    # Combine per-tile partial sums (nb*2 scalars -> global mean / biased var).
    n = B * aux
    total_sum = jnp.sum(stats[:, 0, 0])
    total_sq = jnp.sum(stats[:, 0, 1])
    mean = total_sum / n
    var = jnp.maximum(total_sq / n - mean * mean, 0.0)   # biased (normalization)

    gamma, beta, rm, rv = bn[0], bn[1], bn[2], bn[3]
    scale = gamma * jax.lax.rsqrt(var + BN_EPS)
    shift = beta - scale * mean
    ss = jnp.stack([scale, shift]).astype(jnp.float32)

    # Pass 2: batch-tiled normalize -> lrelu -> fc2 -> tanh.
    out_p = pl.pallas_call(
        _bn_head_kernel,
        out_shape=out_shape,
        grid=(nb,),
        in_specs=[
            pl.BlockSpec(memory_space=pltpu.MemorySpace.SMEM),     # [scale, shift]
            pl.BlockSpec((tb, aux_p), lambda i: (i, 0)),           # y1 (tiled)
            pl.BlockSpec((aux_p, sp_p), lambda i: (0, 0)),         # w2 (resident)
            pl.BlockSpec((1, sp_p), lambda i: (0, 0)),             # b2 (resident)
        ],
        out_specs=out_spec,
        compiler_params=cparams,
        cost_estimate=_cost(2 * B * aux_p * sp_p, B * sp_p,
                            (ss, y1, w2p, b2p), out_bytes),
    )(ss, y1, w2p, b2p)

    out = out_p[:, :spatial].reshape(B, 1, spatial)

    # Running-stat update (PyTorch BatchNorm1d: unbiased var, momentum=0.9).
    var_unbiased = var * (n / max(n - 1, 1))
    new_rm = (1.0 - BN_MOMENTUM) * rm + BN_MOMENTUM * mean
    new_rv = (1.0 - BN_MOMENTUM) * rv + BN_MOMENTUM * var_unbiased
    new_bn = jnp.stack([gamma, beta, new_rm, new_rv])
    return out, new_bn


# ---------------------------------------------------------------------------
# Parameters + pure-JAX reference
# ---------------------------------------------------------------------------

def init_params(key, aux_dim, spatial_dim):
    """Deterministic synthetic parameters (nn.Linear / BatchNorm1d shapes)."""
    k1, k2, k3, k4 = jax.random.split(key, 4)
    bound1 = 1.0 / (IN_DIM ** 0.5)
    w1 = jax.random.uniform(k1, (aux_dim, IN_DIM), jnp.float32, -bound1, bound1)
    b1 = jax.random.uniform(k2, (aux_dim,), jnp.float32, -bound1, bound1)
    bound2 = 1.0 / (aux_dim ** 0.5)
    w2 = jax.random.uniform(k3, (spatial_dim, aux_dim), jnp.float32, -bound2, bound2)
    b2 = jax.random.uniform(k4, (spatial_dim,), jnp.float32, -bound2, bound2)
    bn = jnp.array([1.0, 0.0, 0.0, 1.0], dtype=jnp.float32)  # gamma,beta,rm,rv
    return (w1.T, b1, w2.T, b2, bn)


def reference_forward(h, params, is_training=True):
    """Pure-JAX (f32) reference mirroring the PyTorch module."""
    w1_t, b1, w2_t, b2, bn = params
    gamma, beta, rm, rv = bn[0], bn[1], bn[2], bn[3]
    B = h.shape[0]
    y = h.reshape(B, IN_DIM) @ w1_t + b1
    if is_training:
        mean = jnp.mean(y)
        var = jnp.mean((y - mean) ** 2)
    else:
        mean, var = rm, rv
    y = gamma * (y - mean) / jnp.sqrt(var + BN_EPS) + beta
    y = jnp.where(y >= 0.0, y, LRELU_SLOPE * y)
    z = y @ w2_t + b2
    return jnp.tanh(z).reshape(B, 1, -1)


if __name__ == "__main__":
    AUX_DIM = 32
    SPATIAL_DIM = 16
    B_SMALL = 8
    B_BIG = 300        # exercises a ragged last block (tb=304, 4 masked rows)

    key = jax.random.PRNGKey(0)
    k_h1, k_h2, k_p = jax.random.split(key, 3)
    h_small = jax.random.normal(k_h1, (B_SMALL, 1, IN_DIM), dtype=jnp.float32)
    h_big = jax.random.normal(k_h2, (B_BIG, 1, IN_DIM), dtype=jnp.float32)
    params = init_params(k_p, AUX_DIM, SPATIAL_DIM)

    # Non-trivial running stats / affine for the eval (BN-folded) path.
    w1_t, b1, w2_t, b2, _ = params
    params_eval = (w1_t, b1, w2_t, b2,
                   jnp.array([1.2, -0.1, 0.3, 1.7], dtype=jnp.float32))

    # Padding / casting / BN-fold hoisted out of the forward (done once).
    prep_f32 = prepare_params(params, matmul_dtype=jnp.float32)
    prep_f32_ev = prepare_params(params_eval, matmul_dtype=jnp.float32)
    prep_bf16 = prepare_params(params, matmul_dtype=jnp.bfloat16)
    prep_bf16_ev = prepare_params(params_eval, matmul_dtype=jnp.bfloat16)

    # 1) training mode, f32 MXU path (test-only; production default is bf16)
    out_tr, new_bn = spatial_predictor_forward(h_small, prep_f32, is_training=True,
                                               out_dtype=jnp.float32)
    out_tr = jax.block_until_ready(out_tr)
    ref_tr = reference_forward(h_small, params, is_training=True)
    assert out_tr.shape == (B_SMALL, 1, SPATIAL_DIM)
    assert jnp.allclose(out_tr, ref_tr, atol=1e-4, rtol=1e-4), "train/f32 mismatch"
    assert new_bn.shape == (4,)

    # 2) eval mode, f32 MXU path, BatchNorm folded into fc1
    out_ev, _ = spatial_predictor_forward(h_small, prep_f32_ev, is_training=False,
                                          out_dtype=jnp.float32)
    out_ev = jax.block_until_ready(out_ev)
    ref_ev = reference_forward(h_small, params_eval, is_training=False)
    assert jnp.allclose(out_ev, ref_ev, atol=1e-4, rtol=1e-4), "eval/f32 mismatch"

    # 3) bf16 production path (bf16 MXU inputs, bf16 y1, bf16 outputs) on a
    #    larger batch: ragged last block + masked in-kernel batch statistics.
    out_bf_ev, _ = spatial_predictor_forward(h_big, prep_bf16_ev, is_training=False)
    out_bf_ev = jax.block_until_ready(out_bf_ev)
    ref_bf_ev = reference_forward(h_big, params_eval, is_training=False)
    assert out_bf_ev.shape == (B_BIG, 1, SPATIAL_DIM)
    assert out_bf_ev.dtype == jnp.bfloat16
    assert jnp.allclose(out_bf_ev.astype(jnp.float32), ref_bf_ev,
                        atol=5e-2, rtol=5e-2), "eval/bf16 mismatch"

    out_bf_tr, new_bn_bf = spatial_predictor_forward(h_big, prep_bf16,
                                                     is_training=True)
    out_bf_tr = jax.block_until_ready(out_bf_tr)
    ref_bf_tr = reference_forward(h_big, params, is_training=True)
    assert jnp.allclose(out_bf_tr.astype(jnp.float32), ref_bf_tr,
                        atol=5e-2, rtol=5e-2), "train/bf16 mismatch"
    assert new_bn_bf.shape == (4,)

    print("KERNEL_OK")
</pallas_src>

<mosaic_0001>
module attributes {stable_mosaic.version = 11 : i64} {
  func.func @kernel(%arg0: i32, %arg1: memref<8x512xf32, #tpu.memory_space<vmem>>, %arg2: memref<512x128xf32, #tpu.memory_space<vmem>>, %arg3: memref<1x128xf32, #tpu.memory_space<vmem>>, %arg4: memref<8x128xf32, #tpu.memory_space<vmem>>, %arg5: memref<1x8x128xf32, #tpu.memory_space<vmem>>) attributes {dimension_semantics = [#tpu.dimension_semantics<parallel>], iteration_bounds = array<i64: 1>, scalar_prefetch = 0 : i64, scratch_operands = 0 : i64, tpu.core_type = #tpu.core_type<tc>, window_params = [{transform_indices = @transform_0, window_bounds = array<i64: 8, 512>}, {pipeline_mode = #tpu.pipeline_mode<synchronous>, transform_indices = @transform_1, window_bounds = array<i64: 512, 128>}, {pipeline_mode = #tpu.pipeline_mode<synchronous>, transform_indices = @transform_2, window_bounds = array<i64: 1, 128>}, {transform_indices = @transform_3, window_bounds = array<i64: 8, 128>}, {transform_indices = @transform_4, window_bounds = array<i64: 1, 8, 128>}]} {
    %c0 = arith.constant 0 : index
    %c0_0 = arith.constant 0 : index
    %0 = vector.load %arg1[%c0, %c0_0] : memref<8x512xf32, #tpu.memory_space<vmem>>, vector<8x512xf32>
    %c0_1 = arith.constant 0 : index
    %c0_2 = arith.constant 0 : index
    %1 = vector.load %arg2[%c0_1, %c0_2] : memref<512x128xf32, #tpu.memory_space<vmem>>, vector<512x128xf32>
    %cst = arith.constant dense<0.000000e+00> : vector<8x128xf32>
    %2 = tpu.matmul %0, %1, %cst {dimension_numbers = #tpu.dot_dimension_numbers<[1], [0], [0], [1], [0, 0, 1, 1], [], []>} : vector<8x512xf32>, vector<512x128xf32>, vector<8x128xf32> -> vector<8x128xf32>
    %c0_3 = arith.constant 0 : index
    %c0_4 = arith.constant 0 : index
    %3 = vector.load %arg3[%c0_3, %c0_4] : memref<1x128xf32, #tpu.memory_space<vmem>>, vector<1x128xf32>
    %4 = vector.broadcast %3 : vector<1x128xf32> to vector<8x128xf32>
    %5 = arith.addf %2, %4 : vector<8x128xf32>
    %c0_5 = arith.constant 0 : index
    %c0_6 = arith.constant 0 : index
    %6 = vector.load %arg4[%c0_5, %c0_6] : memref<8x128xf32, #tpu.memory_space<vmem>>, vector<8x128xf32>
    tpu.vector_store %arg4[%c0_5, %c0_6], %5 {strides = array<i32>} : memref<8x128xf32, #tpu.memory_space<vmem>>, vector<8x128xf32>,
    %c8_i32 = arith.constant 8 : i32
    %7 = arith.muli %arg0, %c8_i32 : i32
    %8 = tpu.iota {dimensions = array<i32: 0>} : vector<8x128xi32>
    %9 = vector.broadcast %7 : i32 to vector<8x128xi32>
    %10 = arith.addi %8, %9 : vector<8x128xi32>
    %c8_i32_7 = arith.constant 8 : i32
    %11 = vector.broadcast %c8_i32_7 : i32 to vector<8x128xi32>
    %12 = arith.cmpi slt, %10, %11 : vector<8x128xi32>
    %cst_8 = arith.constant 0.000000e+00 : f32
    %13 = vector.broadcast %cst_8 : f32 to vector<8x128xf32>
    %14 = arith.select %12, %5, %13 : vector<8x128xi1>, vector<8x128xf32>
    %15 = vector.shape_cast %14 : vector<8x128xf32> to vector<1x8x128xf32>
    %cst_9 = arith.constant dense<0.000000e+00> : vector<1xf32>
    %16 = vector.multi_reduction <add>, %15, %cst_9 [1, 2] : vector<1x8x128xf32> to vector<1xf32>
    %17 = vector.shape_cast %16 : vector<1xf32> to vector<1x1x1xf32>
    %18 = vector.extract %17[0, 0, 0] : f32 from vector<1x1x1xf32>
    %19 = arith.mulf %14, %14 : vector<8x128xf32>
    %20 = vector.shape_cast %19 : vector<8x128xf32> to vector<1x8x128xf32>
    %cst_10 = arith.constant dense<0.000000e+00> : vector<1xf32>
    %21 = vector.multi_reduction <add>, %20, %cst_10 [1, 2] : vector<1x8x128xf32> to vector<1xf32>
    %22 = vector.shape_cast %21 : vector<1xf32> to vector<1x1x1xf32>
    %23 = vector.extract %22[0, 0, 0] : f32 from vector<1x1x1xf32>
    %24 = tpu.iota {dimensions = array<i32: 0>} : vector<8x128xi32>
    %25 = tpu.iota {dimensions = array<i32: 1>} : vector<8x128xi32>
    %c0_i32 = arith.constant 0 : i32
    %26 = vector.broadcast %c0_i32 : i32 to vector<8x128xi32>
    %27 = arith.cmpi eq, %24, %26 : vector<8x128xi32>
    %c0_i32_11 = arith.constant 0 : i32
    %28 = vector.broadcast %c0_i32_11 : i32 to vector<8x128xi32>
    %29 = arith.cmpi eq, %25, %28 : vector<8x128xi32>
    %30 = arith.andi %27, %29 : vector<8x128xi1>
    %c0_i32_12 = arith.constant 0 : i32
    %31 = vector.broadcast %c0_i32_12 : i32 to vector<8x128xi32>
    %32 = arith.cmpi eq, %24, %31 : vector<8x128xi32>
    %c1_i32 = arith.constant 1 : i32
    %33 = vector.broadcast %c1_i32 : i32 to vector<8x128xi32>
    %34 = arith.cmpi eq, %25, %33 : vector<8x128xi32>
    %35 = arith.andi %32, %34 : vector<8x128xi1>
    %cst_13 = arith.constant 0.000000e+00 : f32
    %36 = vector.broadcast %23 : f32 to vector<8x128xf32>
    %37 = vector.broadcast %cst_13 : f32 to vector<8x128xf32>
    %38 = arith.select %35, %36, %37 : vector<8x128xi1>, vector<8x128xf32>
    %39 = vector.broadcast %18 : f32 to vector<8x128xf32>
    %40 = arith.select %30, %39, %38 : vector<8x128xi1>, vector<8x128xf32>
    %41 = vector.shape_cast %40 : vector<8x128xf32> to vector<1x8x128xf32>
    %c0_14 = arith.constant 0 : index
    %c0_15 = arith.constant 0 : index
    %c0_16 = arith.constant 0 : index
    %42 = vector.load %arg5[%c0_14, %c0_15, %c0_16] : memref<1x8x128xf32, #tpu.memory_space<vmem>>, vector<1x8x128xf32>
    tpu.vector_store %arg5[%c0_14, %c0_15, %c0_16], %41 {strides = array<i32>} : memref<1x8x128xf32, #tpu.memory_space<vmem>>, vector<1x8x128xf32>,
    return
  }
  func.func @transform_0(%arg0: i32) -> (i32, i32) {
    %c0_i32 = arith.constant 0 : i32
    %c0_i32_0 = arith.constant 0 : i32
    return %arg0, %c0_i32 : i32, i32
  }
  func.func @transform_1(%arg0: i32) -> (i32, i32) {
    %c0_i32 = arith.constant 0 : i32
    %c0_i32_0 = arith.constant 0 : i32
    %c0_i32_1 = arith.constant 0 : i32
    return %c0_i32, %c0_i32_0 : i32, i32
  }
  func.func @transform_2(%arg0: i32) -> (i32, i32) {
    %c0_i32 = arith.constant 0 : i32
    %c0_i32_0 = arith.constant 0 : i32
    %c0_i32_1 = arith.constant 0 : i32
    return %c0_i32, %c0_i32_0 : i32, i32
  }
  func.func @transform_3(%arg0: i32) -> (i32, i32) {
    %c0_i32 = arith.constant 0 : i32
    %c0_i32_0 = arith.constant 0 : i32
    return %arg0, %c0_i32 : i32, i32
  }
  func.func @transform_4(%arg0: i32) -> (i32, i32, i32) {
    %c0_i32 = arith.constant 0 : i32
    %c0_i32_0 = arith.constant 0 : i32
    %c0_i32_1 = arith.constant 0 : i32
    return %arg0, %c0_i32, %c0_i32_0 : i32, i32, i32
  }
}

</mosaic_0001>

<llo_original>
// kernel: tpu_custom_call.1
$region0: #{tpu_custom_call.1}
  #allocation0 [shape = 'u32[]', space=smem, size = 0x4, offset = 0x4, fixed_abs, tag = 'smem constant byte address 0x4 - core index']
  #allocation1 [shape = 'u32[72,128]{1,0:T(1,128)}', space=vmem, size = 0x9000, scoped, tag = 'internal scratch']
  %s0 = inlined_call_operand.hbm [shape: f32[8,512], index: 0, kind: input, shape index: {}]
  %s1 = inlined_call_operand.hbm [shape: f32[512,128], index: 1, kind: input, shape index: {}]
  %s2 = inlined_call_operand.vmem [shape: f32[1,128], index: 2, kind: input, shape index: {}]
  %s3 = inlined_call_operand.hbm [shape: f32[8,128], index: 3, kind: output, shape index: {0}]
  %s4 = inlined_call_operand.hbm [shape: f32[1,8,128], index: 4, kind: output, shape index: {1}]
  %5 = xla_tuple %s3, %s4
  %s6 = sld [smem:[#allocation0]]
  $region38: #{tpu_custom_call.1} parent=0
    _
  %s8 = ssub.s32 1, %s6
  %s9 = scalar_select 0, %s8, %s6
  $region1: #{tpu_custom_call.1} parent=0
    #allocation2 [shape = 'u8[16384]{0}', space=vmem, size = 0x4000, scoped, tag = 'input window, operand 0, single buffered']
    #allocation3 [shape = 's32[1]{0}', space=sflag, size = 0x4, scoped, tag = 'scoped memory for tpu_custom_call.1']
    #allocation4 [shape = 's32[1]{0}', space=sflag, size = 0x4, scoped, tag = 'scoped memory for tpu_custom_call.1']
    #allocation5 [shape = 'u8[262144]{0}', space=vmem, size = 0x40000, scoped, tag = 'input window, operand 1, single buffered']
    #allocation6 [shape = 's32[1]{0}', space=sflag, size = 0x4, scoped, tag = 'scoped memory for tpu_custom_call.1']
    #allocation7 [shape = 'u8[4096]{0}', space=vmem, size = 0x1000, scoped, tag = 'output window, operand 0, single buffered']
    #allocation8 [shape = 'u8[4096]{0}', space=vmem, size = 0x1000, scoped, tag = 'output window, operand 1, single buffered']
    #allocation9 [shape = 's32[1]{0}', space=sflag, size = 0x4, scoped, tag = 'scoped memory for tpu_custom_call.1']
    %10 = vsyncpa [#allocation3], 0
    %11 = vsyncpa [#allocation6], 0
    %12 = vsyncpa [#allocation4], 0
    %13 = vsyncpa [#allocation9], 0
    // Predicated region
    $region2: #{tpu_custom_call.1} parent=1 // pred_check
      _
    $region3: #{tpu_custom_call.1} parent=1 // pred_check_branch
      %15 = sbr.rel (0) target = $region5
    $region4: #{tpu_custom_call.1} parent=1 // pred_region
      %17 = vsyncadd [#allocation3], 0
      %s19 = sshll.u32 %s0, 4
      %s20 = int_to_ptr.hbm [resolvable:$true] %s19
      %s21 = sshll.u32 [#allocation2], 4
      %s22 = int_to_ptr.vmem [resolvable:$true] %s21
      %24 = dma.hbm_to_vmem [thread:$0]  %s20, 512, %s22, [#allocation3]
    $region5: #{tpu_custom_call.1} parent=1 // pred_fallthru
      _
    // Predicated region
    $region6: #{tpu_custom_call.1} parent=1 // pred_check
      _
    $region7: #{tpu_custom_call.1} parent=1 // pred_check_branch
      %26 = sbr.rel (0) target = $region9
    $region8: #{tpu_custom_call.1} parent=1 // pred_region
      %28 = vsyncadd [#allocation6], 0
      %s29 = sshll.u32 %s1, 4
      %s30 = int_to_ptr.hbm [resolvable:$true] %s29
      %s31 = sshll.u32 [#allocation5], 4
      %s32 = int_to_ptr.vmem [resolvable:$true] %s31
      %37 = dma.hbm_to_vmem [thread:$0]  %s30, 8192, %s32, [#allocation6], 128, 128, 8
    $region9: #{tpu_custom_call.1} parent=1 // pred_fallthru
      _
    // Predicated region
    $region10: #{tpu_custom_call.1} parent=1 // pred_check
      _
    $region11: #{tpu_custom_call.1} parent=1 // pred_check_branch
      %39 = sbr.rel (0) target = $region13
    $region12: #{tpu_custom_call.1} parent=1 // pred_region
      _
    $region13: #{tpu_custom_call.1} parent=1 // pred_fallthru
      _
    // Predicated region
    $region14: #{tpu_custom_call.1} parent=1 // pred_check
      _
    $region15: #{tpu_custom_call.1} parent=1 // pred_check_branch
      %41 = sbr.rel (0) target = $region17
    $region16: #{tpu_custom_call.1} parent=1 // pred_region
      %43 = dma.done [#allocation3], 512
    $region17: #{tpu_custom_call.1} parent=1 // pred_fallthru
      _
    // Predicated region
    $region18: #{tpu_custom_call.1} parent=1 // pred_check
      _
    $region19: #{tpu_custom_call.1} parent=1 // pred_check_branch
      %45 = sbr.rel (0) target = $region21
    $region20: #{tpu_custom_call.1} parent=1 // pred_region
      %47 = dma.done [#allocation6], 8192
    $region21: #{tpu_custom_call.1} parent=1 // pred_fallthru
      _
    %v48 = vld [vmem:[#allocation2] sm:$0xff]
    %v49 = vld [vmem:[#allocation2 + $0x8] sm:$0xff]
    %v50 = vld [vmem:[#allocation2 + $0x10] sm:$0xff]
    %v51 = vld [vmem:[#allocation2 + $0x18] sm:$0xff]
    %v52 = vld [vmem:[#allocation5] sm:$0xff]
    %v53 = vld [vmem:[#allocation5 + $0x8] sm:$0xff]
    %v54 = vld [vmem:[#allocation5 + $0x10] sm:$0xff]
    %v55 = vld [vmem:[#allocation5 + $0x18] sm:$0xff]
    %v56 = vld [vmem:[#allocation5 + $0x20] sm:$0xff]
    %v57 = vld [vmem:[#allocation5 + $0x28] sm:$0xff]
    %v58 = vld [vmem:[#allocation5 + $0x30] sm:$0xff]
    %v59 = vld [vmem:[#allocation5 + $0x38] sm:$0xff]
    %v60 = vld [vmem:[#allocation5 + $0x40] sm:$0xff]
    %v61 = vld [vmem:[#allocation5 + $0x48] sm:$0xff]
    %v62 = vld [vmem:[#allocation5 + $0x50] sm:$0xff]
    %v63 = vld [vmem:[#allocation5 + $0x58] sm:$0xff]
    %v64 = vld [vmem:[#allocation5 + $0x60] sm:$0xff]
    %v65 = vld [vmem:[#allocation5 + $0x68] sm:$0xff]
    %v66 = vld [vmem:[#allocation5 + $0x70] sm:$0xff]
    %v67 = vld [vmem:[#allocation5 + $0x78] sm:$0xff]
    %v68 = vld [vmem:[#allocation5 + $0x80] sm:$0xff]
    %v69 = vld [vmem:[#allocation5 + $0x88] sm:$0xff]
    %v70 = vld [vmem:[#allocation5 + $0x90] sm:$0xff]
    %v71 = vld [vmem:[#allocation5 + $0x98] sm:$0xff]
    %v72 = vld [vmem:[#allocation5 + $0xa0] sm:$0xff]
    %v73 = vld [vmem:[#allocation5 + $0xa8] sm:$0xff]
    %v74 = vld [vmem:[#allocation5 + $0xb0] sm:$0xff]
    %v75 = vld [vmem:[#allocation5 + $0xb8] sm:$0xff]
    %v76 = vld [vmem:[#allocation5 + $0xc0] sm:$0xff]
    %v77 = vld [vmem:[#allocation5 + $0xc8] sm:$0xff]
    %v78 = vld [vmem:[#allocation5 + $0xd0] sm:$0xff]
    %v79 = vld [vmem:[#allocation5 + $0xd8] sm:$0xff]
    %v80 = vld [vmem:[#allocation5 + $0xe0] sm:$0xff]
    %v81 = vld [vmem:[#allocation5 + $0xe8] sm:$0xff]
    %v82 = vld [vmem:[#allocation5 + $0xf0] sm:$0xff]
    %v83 = vld [vmem:[#allocation5 + $0xf8] sm:$0xff]
    %v84 = vld [vmem:[#allocation5 + $0x100] sm:$0xff]
    %v85 = vld [vmem:[#allocation5 + $0x108] sm:$0xff]
    %v86 = vld [vmem:[#allocation5 + $0x110] sm:$0xff]
    %v87 = vld [vmem:[#allocation5 + $0x118] sm:$0xff]
    %v88 = vld [vmem:[#allocation5 + $0x120] sm:$0xff]
    %v89 = vld [vmem:[#allocation5 + $0x128] sm:$0xff]
    %v90 = vld [vmem:[#allocation5 + $0x130] sm:$0xff]
    %v91 = vld [vmem:[#allocation5 + $0x138] sm:$0xff]
    %v92 = vld [vmem:[#allocation5 + $0x140] sm:$0xff]
    %v93 = vld [vmem:[#allocation5 + $0x148] sm:$0xff]
    %v94 = vld [vmem:[#allocation5 + $0x150] sm:$0xff]
    %v95 = vld [vmem:[#allocation5 + $0x158] sm:$0xff]
    %v96 = vld [vmem:[#allocation5 + $0x160] sm:$0xff]
    %v97 = vld [vmem:[#allocation5 + $0x168] sm:$0xff]
    %v98 = vld [vmem:[#allocation5 + $0x170] sm:$0xff]
    %v99 = vld [vmem:[#allocation5 + $0x178] sm:$0xff]
    %v100 = vld [vmem:[#allocation5 + $0x180] sm:$0xff]
    %v101 = vld [vmem:[#allocation5 + $0x188] sm:$0xff]
    %v102 = vld [vmem:[#allocation5 + $0x190] sm:$0xff]
    %v103 = vld [vmem:[#allocation5 + $0x198] sm:$0xff]
    %v104 = vld [vmem:[#allocation5 + $0x1a0] sm:$0xff]
    %v105 = vld [vmem:[#allocation5 + $0x1a8] sm:$0xff]
    %v106 = vld [vmem:[#allocation5 + $0x1b0] sm:$0xff]
    %v107 = vld [vmem:[#allocation5 + $0x1b8] sm:$0xff]
    %v108 = vld [vmem:[#allocation5 + $0x1c0] sm:$0xff]
    %v109 = vld [vmem:[#allocation5 + $0x1c8] sm:$0xff]
    %v110 = vld [vmem:[#allocation5 + $0x1d0] sm:$0xff]
    %v111 = vld [vmem:[#allocation5 + $0x1d8] sm:$0xff]
    %v112 = vld [vmem:[#allocation5 + $0x1e0] sm:$0xff]
    %v113 = vld [vmem:[#allocation5 + $0x1e8] sm:$0xff]
    %v114 = vld [vmem:[#allocation5 + $0x1f0] sm:$0xff]
    %v115 = vld [vmem:[#allocation5 + $0x1f8] sm:$0xff]
    %v116 = vld [vmem:[%s2] sm:$0x1]
    %v118 = vperm.slane %v116, 0
    %120 = vmatpush.msra.mxu0 %v67
    %121 = vmatpush.msra.mxu0 %v66
    %122 = vmatpush.msra.mxu0 %v65
    %123 = vmatpush.msra.mxu0 %v64
    %124 = vmatpush.msra.mxu0 %v63
    %125 = vmatpush.msra.mxu0 %v62
    %126 = vmatpush.msra.mxu0 %v61
    %127 = vmatpush.msra.mxu0 %v60
    %128 = vmatpush.msra.mxu0 %v59
    %129 = vmatpush.msra.mxu0 %v58
    %130 = vmatpush.msra.mxu0 %v57
    %131 = vmatpush.msra.mxu0 %v56
    %132 = vmatpush.msra.mxu0 %v55
    %133 = vmatpush.msra.mxu0 %v54
    %134 = vmatpush.msra.mxu0 %v53
    %135 = vmatpush.msra.mxu0 %v52
    %136 = vmatmul.f32.gmra.mxu0 %v48
    %v137 = vpop.f32.mrf.mxu0
    %v138 = vadd.f32 %v118, %v137
    %139 = vdwg.mxu0
    %140 = vmatpush.msra.mxu0 %v83
    %141 = vmatpush.msra.mxu0 %v82
    %142 = vmatpush.msra.mxu0 %v81
    %143 = vmatpush.msra.mxu0 %v80
    %144 = vmatpush.msra.mxu0 %v79
    %145 = vmatpush.msra.mxu0 %v78
    %146 = vmatpush.msra.mxu0 %v77
    %147 = vmatpush.msra.mxu0 %v76
    %148 = vmatpush.msra.mxu0 %v75
    %149 = vmatpush.msra.mxu0 %v74
    %150 = vmatpush.msra.mxu0 %v73
    %151 = vmatpush.msra.mxu0 %v72
    %152 = vmatpush.msra.mxu0 %v71
    %153 = vmatpush.msra.mxu0 %v70
    %154 = vmatpush.msra.mxu0 %v69
    %155 = vmatpush.msra.mxu0 %v68
    %156 = vmatmul.f32.gmra.mxu0 %v49
    %v157 = vpop.f32.mrf.mxu0
    %v158 = vadd.f32 %v138, %v157
    %159 = vdwg.mxu0
    %160 = vmatpush.msra.mxu0 %v99
    %161 = vmatpush.msra.mxu0 %v98
    %162 = vmatpush.msra.mxu0 %v97
    %163 = vmatpush.msra.mxu0 %v96
    %164 = vmatpush.msra.mxu0 %v95
    %165 = vmatpush.msra.mxu0 %v94
    %166 = vmatpush.msra.mxu0 %v93
    %167 = vmatpush.msra.mxu0 %v92
    %168 = vmatpush.msra.mxu0 %v91
    %169 = vmatpush.msra.mxu0 %v90
    %170 = vmatpush.msra.mxu0 %v89
    %171 = vmatpush.msra.mxu0 %v88
    %172 = vmatpush.msra.mxu0 %v87
    %173 = vmatpush.msra.mxu0 %v86
    %174 = vmatpush.msra.mxu0 %v85
    %175 = vmatpush.msra.mxu0 %v84
    %176 = vmatmul.f32.gmra.mxu0 %v50
    %v177 = vpop.f32.mrf.mxu0
    %v178 = vadd.f32 %v158, %v177
    %179 = vdwg.mxu0
    %180 = vmatpush.msra.mxu0 %v115
    %181 = vmatpush.msra.mxu0 %v114
    %182 = vmatpush.msra.mxu0 %v113
    %183 = vmatpush.msra.mxu0 %v112
    %184 = vmatpush.msra.mxu0 %v111
    %185 = vmatpush.msra.mxu0 %v110
    %186 = vmatpush.msra.mxu0 %v109
    %187 = vmatpush.msra.mxu0 %v108
    %188 = vmatpush.msra.mxu0 %v107
    %189 = vmatpush.msra.mxu0 %v106
    %190 = vmatpush.msra.mxu0 %v105
    %191 = vmatpush.msra.mxu0 %v104
    %192 = vmatpush.msra.mxu0 %v103
    %193 = vmatpush.msra.mxu0 %v102
    %194 = vmatpush.msra.mxu0 %v101
    %195 = vmatpush.msra.mxu0 %v100
    %196 = vmatmul.f32.gmra.mxu0 %v51
    %v197 = vpop.f32.mrf.mxu0
    %v198 = vadd.f32 %v178, %v197
    %199 = vdwg.mxu0
    %200 = vst [vmem:[#allocation7] sm:$0xff] %v198
    %s201 = smul.u32 0, 8
    %v202 = vlaneseq
    %v203 = vshrl.u32 %v202, 7
    %v204 = vstv %s201
    %v205 = vadd.s32 %v203, %v204
    %vm206 = vcmp.lt.s32.totalorder %v205, 8
    %v207 = vsel %vm206, %v198, 0.0
    %208 = vadd.xlane.f32.xlu0 %v207
    %v209 = vpop.xlane.xlu0 %208
    %v210 = vrot.slane %v209, 4
    %v211 = vadd.f32 %v209, %v210
    %v212 = vrot.slane %v211, 2
    %v213 = vadd.f32 %v211, %v212
    %v214 = vrot.slane %v213, 1
    %v215 = vadd.f32 %v213, %v214
    %s216 = vtos %v215
    %v217 = vmul.f32 %v207, %v207
    %218 = vadd.xlane.f32.xlu0 %v217
    %v219 = vpop.xlane.xlu0 %218
    %v220 = vrot.slane %v219, 4
    %v221 = vadd.f32 %v219, %v220
    %v222 = vrot.slane %v221, 2
    %v223 = vadd.f32 %v221, %v222
    %v224 = vrot.slane %v223, 1
    %v225 = vadd.f32 %v223, %v224
    %s226 = vtos %v225
    %v227 = vlaneseq
    %v228 = vand.u32 %v227, 127
    %vm229 = vcmp.eq.s32.totalorder %v203, 0
    %vm230 = vcmp.eq.s32.totalorder %v228, 0
    %vm231 = vmand %vm229, %vm230
    %vm232 = vcmp.eq.s32.totalorder %v228, 1
    %vm233 = vmand %vm229, %vm232
    %v234 = vstv %s226
    %v235 = vsel %vm233, %v234, 0.0
    %v236 = vstv %s216
    %v237 = vsel %vm231, %v236, %v235
    %238 = vst [vmem:[#allocation8] sm:$0xff] %v237
    // Predicated region
    $region22: #{tpu_custom_call.1} parent=1 // pred_check
      _
    $region23: #{tpu_custom_call.1} parent=1 // pred_check_branch
      %240 = sbr.rel (0) target = $region25
    $region24: #{tpu_custom_call.1} parent=1 // pred_region
      %242 = vsyncadd [#allocation4], 0
      %s244 = sshll.u32 [#allocation7], 4
      %s245 = int_to_ptr.vmem [resolvable:$true] %s244
      %s246 = sshll.u32 %s3, 4
      %s247 = int_to_ptr.hbm [resolvable:$true] %s246
      %249 = dma.vmem_to_hbm [thread:$0]  %s245, 128, %s247, [#allocation4]
    $region25: #{tpu_custom_call.1} parent=1 // pred_fallthru
      _
    // Predicated region
    $region26: #{tpu_custom_call.1} parent=1 // pred_check
      _
    $region27: #{tpu_custom_call.1} parent=1 // pred_check_branch
      %251 = sbr.rel (0) target = $region29
    $region28: #{tpu_custom_call.1} parent=1 // pred_region
      %253 = vsyncadd [#allocation9], 0
      %s255 = sshll.u32 [#allocation8], 4
      %s256 = int_to_ptr.vmem [resolvable:$true] %s255
      %s257 = sshll.u32 %s4, 4
      %s258 = int_to_ptr.hbm [resolvable:$true] %s257
      %260 = dma.vmem_to_hbm [thread:$0]  %s256, 128, %s258, [#allocation9]
    $region29: #{tpu_custom_call.1} parent=1 // pred_fallthru
      _
    // Predicated region
    $region30: #{tpu_custom_call.1} parent=1 // pred_check
      _
    $region31: #{tpu_custom_call.1} parent=1 // pred_check_branch
      %262 = sbr.rel (0) target = $region33
    $region32: #{tpu_custom_call.1} parent=1 // pred_region
      %264 = dma.done [#allocation4], 128
    $region33: #{tpu_custom_call.1} parent=1 // pred_fallthru
      _
    // Predicated region
    $region34: #{tpu_custom_call.1} parent=1 // pred_check
      _
    $region35: #{tpu_custom_call.1} parent=1 // pred_check_branch
      %266 = sbr.rel (0) target = $region37
    $region36: #{tpu_custom_call.1} parent=1 // pred_region
      %268 = dma.done [#allocation9], 128
    $region37: #{tpu_custom_call.1} parent=1 // pred_fallthru
      _
    %269 = vsyncpa [#allocation3], 1
    %270 = vsyncpa [#allocation6], 1
    %271 = vsyncpa [#allocation4], 1
    %272 = vsyncpa [#allocation9], 1

</llo_original>
